<compile_context>
chip_gen: v7x
topology: tpu7x:2x2x1
jax: 0.10.0
libtpu: 0.0.40
codegen_flags: <defaults>
</compile_context>

<pallas_src>
import functools

import jax
import jax.numpy as jnp
from jax.experimental import pallas as pl
from jax.experimental.pallas import tpu as pltpu

_LANE = 128
_SUBLANE = 8


def _partial_sums_kernel(p_ref, t_ref, out_ref, *, tile_rows, total_rows,
                         need_row_mask):
    """Per-tile partial sums for one map, packed into one (8,128) f32 block.

    Row 0 of the output block (rest zeros):
      lane 0: sum(t)   lane 1: sum(log x | t > 0.5)   lane 2: sum(log x)
    with x = clamp_probs(p) if t > 0.5 else clamp_probs(1 - p).
    """
    r = pl.program_id(0)

    p = p_ref[...].astype(jnp.float32)
    t = t_ref[...].astype(jnp.float32)

    # torch.distributions.utils.clamp_probs (float32 eps).  Note
    # clamp_probs(1 - p) == 1 - clamp_probs(p) exactly, so one clip + one log
    # covers both the positive and the negative BCE branch.
    eps = jnp.float32(jnp.finfo(jnp.float32).eps)
    p_plus = jnp.clip(p, eps, 1.0 - eps)
    mask_pos = t > 0.5
    x = jnp.where(mask_pos, p_plus, 1.0 - p_plus)
    logx = jnp.log(x)

    sub = jax.lax.broadcasted_iota(jnp.int32, (_SUBLANE, _LANE), 0)
    lane = jax.lax.broadcasted_iota(jnp.int32, (_SUBLANE, _LANE), 1)

    def emit(s_t, s_lpos, s_lall):
        # Lane-dense packed scalar triple -> one unmasked vreg store per tile.
        out_ref[...] = jnp.where(
            (sub == 0) & (lane == 0), s_t,
            jnp.where((sub == 0) & (lane == 1), s_lpos,
                      jnp.where((sub == 0) & (lane == 2), s_lall,
                                jnp.float32(0.0))))

    def emit_unmasked():
        emit(jnp.sum(t),
             jnp.sum(jnp.where(mask_pos, logx, 0.0)),
             jnp.sum(logx))

    if need_row_mask:
        last = pl.num_programs(0) - 1

        @pl.when(r == last)
        def _():
            # Ragged tail: rows past the true extent hold garbage from the
            # partial DMA (possibly NaN/Inf); mask BEFORE every reduction.
            row = r * tile_rows + jax.lax.broadcasted_iota(jnp.int32, p.shape, 0)
            valid = row < total_rows
            mp = jnp.logical_and(mask_pos, valid)
            emit(jnp.sum(jnp.where(valid, t, 0.0)),
                 jnp.sum(jnp.where(mp, logx, 0.0)),
                 jnp.sum(jnp.where(valid, logx, 0.0)))

        @pl.when(r != last)
        def _():
            # Interior tiles skip the iota + extra selects entirely.
            emit_unmasked()
    else:
        emit_unmasked()


def _physical_vmem_bytes():
    """Physical VMEM per core, with a conservative fallback."""
    try:
        v = int(pltpu.get_tpu_info().vmem_capacity_bytes)
        if v > 0:
            return v
    except Exception:
        pass
    kind = ""
    try:
        kind = jax.devices()[0].device_kind.lower()
    except Exception:
        pass
    return 64 * 2**20 if "v7" in kind else 128 * 2**20


def _lane_dense_view(n):
    """Pick (rows, cols) with cols a multiple of 128 dividing n, if possible."""
    best = None
    for cols in (4096, 2048, 1024, 512, 256, 128):
        if n % cols:
            continue
        rows = n // cols
        if rows >= _SUBLANE:
            return rows, cols          # widest view that still has >=8 rows
        if best is None:
            best = (rows, cols)
    return best


def _choose_tile_rows(num_rows, width, pred_itemsize, tgt_itemsize, vmem_cap):
    """Rows per block: multiple of 32, sized from the generation VMEM cap."""
    # Double-buffered pred + target input blocks plus ~3 f32-sized live
    # temporaries in the body; keep 25% of the scoped cap as compiler headroom.
    bytes_per_elem = 2 * pred_itemsize + 2 * tgt_itemsize + 12
    max_elems = int(vmem_cap * 0.75) // bytes_per_elem
    max_elems = min(max_elems, 4 * 1024 * 1024)        # <= 16 MiB f32 per block
    rows_fit = max(1, max_elems // max(1, width))
    tile = max(32, (rows_fit // 32) * 32)
    if num_rows <= tile:
        return num_rows                                # single full-extent block
    return tile


def _map_partial_sums(pred, target, *, tile_rows=None):
    """Run the kernel for one map; returns (sum_t, sum_log_pos, sum_log_all)."""
    n = pred.size
    if target.size != n:
        raise ValueError("pred/target element counts differ")

    pred_b = jnp.dtype(pred.dtype).itemsize
    tgt_b = jnp.dtype(target.dtype).itemsize

    view = _lane_dense_view(n)
    if view is None:                                   # width not 128-friendly
        w = pred.shape[-1]
        view = (n // w, w)
    rows, cols = view
    p2 = pred.reshape(rows, cols)                      # keeps native dtype (f32/bf16)
    t2 = target.reshape(rows, cols)                    # keeps native dtype (u8/...)

    phys_vmem = _physical_vmem_bytes()
    vmem_cap = max(16 * 2**20, int(phys_vmem * 0.75))  # ~48 MiB v7x, ~96 MiB v5e/v6e

    if tile_rows is None:
        tile_rows = _choose_tile_rows(rows, cols, pred_b, tgt_b, vmem_cap)
    else:
        tile_rows = min(int(tile_rows), rows)
        if tile_rows < rows and tile_rows % 32 != 0:
            raise ValueError("tile_rows must be a multiple of 32 (or >= rows)")

    nr = pl.cdiv(rows, tile_rows)
    need_row_mask = (rows % tile_rows) != 0

    block_elems = tile_rows * cols
    est_bytes = block_elems * (2 * pred_b + 2 * tgt_b + 12) + (1 << 20)
    vmem_limit = int(min(vmem_cap, max(est_bytes, 16 * 2**20)))

    kernel = functools.partial(_partial_sums_kernel, tile_rows=tile_rows,
                               total_rows=rows, need_row_mask=need_row_mask)

    out = pl.pallas_call(
        kernel,
        out_shape=jax.ShapeDtypeStruct((nr * _SUBLANE, _LANE), jnp.float32),
        grid=(nr,),
        in_specs=[
            pl.BlockSpec((tile_rows, cols), lambda r: (r, 0)),
            pl.BlockSpec((tile_rows, cols), lambda r: (r, 0)),
        ],
        out_specs=pl.BlockSpec((_SUBLANE, _LANE), lambda r: (r, 0)),
        compiler_params=pltpu.CompilerParams(
            # Per-tile partials are independent -> megacore can split the row
            # axis across both TensorCores on v7x; no-op on v5e/v6e.
            dimension_semantics=("parallel",),
            vmem_limit_bytes=vmem_limit),
    )(p2, t2)

    sums = jnp.sum(out, axis=0)                        # lanes 0..2 hold the sums
    return sums[0], sums[1], sums[2]


def cobnet_loss(y_sides, y_fused, target_sides=None, target_fused=None, *,
                tile_rows=None):
    """Pallas implementation of CobNetLoss.forward.  Returns shape (1,) f32."""
    keys = sorted(y_sides.keys())
    h, w = y_sides[keys[0]].shape[-2:]
    n_elems = jnp.float32(h * w)                       # torch.prod(Tensor([H, W]))

    pairs = []
    if target_sides is not None:
        pairs.extend((y_sides[k], target_sides[k]) for k in keys)
    if target_fused is not None:
        pairs.append((y_fused, target_fused))
    if not pairs:                                      # both targets None -> Tensor([0])
        return jnp.zeros((1,), jnp.float32)

    total = jnp.zeros((), jnp.float32)
    for pred, tgt in pairs:
        s_t, s_lpos, s_lall = _map_partial_sums(pred, tgt, tile_rows=tile_rows)
        # beta from the FULL-map target sum, divided by H*W only (module parity).
        beta = 1.0 - s_t / n_elems
        pos_term = -s_lpos
        neg_term = -(s_lall - s_lpos)
        total = total + beta * pos_term + (1.0 - beta) * neg_term
    return total.reshape(1)


def _reference_loss(y_sides, y_fused, target_sides, target_fused):
    """Plain-JAX reference mirroring the PyTorch forward (two clips, two logs)."""
    keys = sorted(y_sides.keys())
    h, w = y_sides[keys[0]].shape[-2:]
    n_elems = jnp.float32(h * w)
    eps = jnp.float32(jnp.finfo(jnp.float32).eps)

    def one_term(p, t):
        p = p.astype(jnp.float32)
        t = t.astype(jnp.float32).reshape(p.shape)
        beta = 1.0 - jnp.sum(t) / n_elems
        p_plus = jnp.clip(p, eps, 1.0 - eps)
        p_neg = jnp.clip(1.0 - p, eps, 1.0 - eps)
        mask = t > 0.5
        pos = -jnp.sum(jnp.where(mask, jnp.log(p_plus), 0.0))
        neg = -jnp.sum(jnp.where(mask, 0.0, jnp.log(p_neg)))
        return beta * pos + (1.0 - beta) * neg

    total = jnp.zeros((1,), jnp.float32)
    for k in keys:
        total = total + one_term(y_sides[k], target_sides[k])
    total = total + one_term(y_fused, target_fused)
    return total


if __name__ == "__main__":
    # ---- config 1: module-like small shapes; lane-dense single-block path ----
    B, H, W = 2, 16, 16
    num_sides = 4
    key = jax.random.PRNGKey(0)

    y_sides, target_sides = {}, {}
    for s in range(num_sides):
        key, k1, k2 = jax.random.split(key, 3)
        y_sides[s] = jax.random.uniform(k1, (B, H, W), jnp.float32)
        target_sides[s] = (jax.random.uniform(k2, (B, 1, H, W)) > 0.5
                           ).astype(jnp.uint8)          # narrow native target dtype
    key, k1, k2 = jax.random.split(key, 3)
    y_fused = jax.random.uniform(k1, (B, H, W), jnp.float32)
    target_fused = (jax.random.uniform(k2, (B, 1, H, W)) > 0.5).astype(jnp.uint8)

    loss = jax.jit(cobnet_loss)(y_sides, y_fused, target_sides, target_fused)
    loss = jax.block_until_ready(loss)
    ref = _reference_loss(y_sides, y_fused, target_sides, target_fused)
    assert loss.shape == (1,)
    assert jnp.allclose(loss, ref, rtol=2e-4, atol=1e-2), (loss, ref)

    # ---- config 2: lane-dense (72, 4096) view, forced tiling + ragged tail ---
    B2, H2, W2 = 2, 1152, 128                          # 294912 elems -> (72, 4096)
    key = jax.random.PRNGKey(1)
    y2, t2 = {}, {}
    for s in range(2):
        key, k1, k2 = jax.random.split(key, 3)
        y2[s] = jax.random.uniform(k1, (B2, H2, W2), jnp.float32)
        t2[s] = (jax.random.uniform(k2, (B2, 1, H2, W2)) > 0.5).astype(jnp.uint8)
    key, k1, k2 = jax.random.split(key, 3)
    y2_f = jax.random.uniform(k1, (B2, H2, W2), jnp.float32)
    t2_f = (jax.random.uniform(k2, (B2, 1, H2, W2)) > 0.5).astype(jnp.uint8)

    loss2 = cobnet_loss(y2, y2_f, t2, t2_f, tile_rows=32)   # nr=3, tail of 8 rows
    loss2 = jax.block_until_ready(loss2)
    ref2 = _reference_loss(y2, y2_f, t2, t2_f)
    assert jnp.allclose(loss2, ref2, rtol=5e-4, atol=1.0), (loss2, ref2)

    # ---- config 3: non-128-multiple width fallback view + bf16 predictions ---
    B3, H3, W3 = 3, 24, 17                             # 1224 elems -> (72, 17) view
    key = jax.random.PRNGKey(2)
    y3, t3 = {}, {}
    for s in range(2):
        key, k1, k2 = jax.random.split(key, 3)
        y3[s] = jax.random.uniform(k1, (B3, H3, W3), jnp.float32).astype(jnp.bfloat16)
        t3[s] = (jax.random.uniform(k2, (B3, 1, H3, W3)) > 0.5).astype(jnp.uint8)
    key, k1, k2 = jax.random.split(key, 3)
    y3_f = jax.random.uniform(k1, (B3, H3, W3), jnp.float32).astype(jnp.bfloat16)
    t3_f = (jax.random.uniform(k2, (B3, 1, H3, W3)) > 0.5).astype(jnp.uint8)

    loss3 = cobnet_loss(y3, y3_f, t3, t3_f, tile_rows=32)   # ragged tail, bf16 preds
    loss3 = jax.block_until_ready(loss3)
    ref3 = _reference_loss(y3, y3_f, t3, t3_f)
    assert jnp.allclose(loss3, ref3, rtol=1e-3, atol=1e-1), (loss3, ref3)

    print("KERNEL_OK")
</pallas_src>

<mosaic_0001>
module attributes {stable_mosaic.version = 11 : i64} {
  func.func @_partial_sums_kernel(%arg0: i32, %arg1: memref<1x512xf32, #tpu.memory_space<vmem>>, %arg2: memref<1x512xi8, #tpu.memory_space<vmem>>, %arg3: memref<8x128xf32, #tpu.memory_space<vmem>>) attributes {dimension_semantics = [#tpu.dimension_semantics<parallel>], iteration_bounds = array<i64: 1>, scalar_prefetch = 0 : i64, scratch_operands = 0 : i64, tpu.core_type = #tpu.core_type<tc>, window_params = [{transform_indices = @transform_0, window_bounds = array<i64: 1, 512>}, {transform_indices = @transform_1, window_bounds = array<i64: 1, 512>}, {transform_indices = @transform_2, window_bounds = array<i64: 8, 128>}]} {
    %c0 = arith.constant 0 : index
    %c0_0 = arith.constant 0 : index
    %0 = vector.load %arg1[%c0, %c0_0] : memref<1x512xf32, #tpu.memory_space<vmem>>, vector<1x512xf32>
    %c0_1 = arith.constant 0 : index
    %c0_2 = arith.constant 0 : index
    %1 = vector.load %arg2[%c0_1, %c0_2] : memref<1x512xi8, #tpu.memory_space<vmem>>, vector<1x512xi8>
    %2 = arith.uitofp %1 : vector<1x512xi8> to vector<1x512xf32>
    %cst = arith.constant 1.000000e+00 : f32
    %cst_3 = arith.constant 1.1920929E-7 : f32
    %3 = arith.subf %cst, %cst_3 : f32
    %cst_4 = arith.constant 1.1920929E-7 : f32
    %4 = vector.broadcast %cst_4 : f32 to vector<1x512xf32>
    %5 = arith.maximumf %4, %0 : vector<1x512xf32>
    %6 = vector.broadcast %3 : f32 to vector<1x512xf32>
    %7 = arith.minimumf %6, %5 : vector<1x512xf32>
    %cst_5 = arith.constant 5.000000e-01 : f32
    %8 = vector.broadcast %cst_5 : f32 to vector<1x512xf32>
    %9 = arith.cmpf ogt, %2, %8 : vector<1x512xf32>
    %cst_6 = arith.constant 1.000000e+00 : f32
    %10 = vector.broadcast %cst_6 : f32 to vector<1x512xf32>
    %11 = arith.subf %10, %7 : vector<1x512xf32>
    %12 = arith.select %9, %7, %11 : vector<1x512xi1>, vector<1x512xf32>
    %13 = math.log %12 : vector<1x512xf32>
    %14 = tpu.iota {dimensions = array<i32: 0>} : vector<8x128xi32>
    %15 = tpu.iota {dimensions = array<i32: 1>} : vector<8x128xi32>
    %16 = vector.shape_cast %2 : vector<1x512xf32> to vector<1x1x512xf32>
    %cst_7 = arith.constant dense<0.000000e+00> : vector<1xf32>
    %17 = vector.multi_reduction <add>, %16, %cst_7 [1, 2] : vector<1x1x512xf32> to vector<1xf32>
    %18 = vector.shape_cast %17 : vector<1xf32> to vector<1x1x1xf32>
    %19 = vector.extract %18[0, 0, 0] : f32 from vector<1x1x1xf32>
    %cst_8 = arith.constant 0.000000e+00 : f32
    %20 = vector.broadcast %cst_8 : f32 to vector<1x512xf32>
    %21 = arith.select %9, %13, %20 : vector<1x512xi1>, vector<1x512xf32>
    %22 = vector.shape_cast %21 : vector<1x512xf32> to vector<1x1x512xf32>
    %cst_9 = arith.constant dense<0.000000e+00> : vector<1xf32>
    %23 = vector.multi_reduction <add>, %22, %cst_9 [1, 2] : vector<1x1x512xf32> to vector<1xf32>
    %24 = vector.shape_cast %23 : vector<1xf32> to vector<1x1x1xf32>
    %25 = vector.extract %24[0, 0, 0] : f32 from vector<1x1x1xf32>
    %26 = vector.shape_cast %13 : vector<1x512xf32> to vector<1x1x512xf32>
    %cst_10 = arith.constant dense<0.000000e+00> : vector<1xf32>
    %27 = vector.multi_reduction <add>, %26, %cst_10 [1, 2] : vector<1x1x512xf32> to vector<1xf32>
    %28 = vector.shape_cast %27 : vector<1xf32> to vector<1x1x1xf32>
    %29 = vector.extract %28[0, 0, 0] : f32 from vector<1x1x1xf32>
    %c0_i32 = arith.constant 0 : i32
    %30 = vector.broadcast %c0_i32 : i32 to vector<8x128xi32>
    %31 = arith.cmpi eq, %14, %30 : vector<8x128xi32>
    %c0_i32_11 = arith.constant 0 : i32
    %32 = vector.broadcast %c0_i32_11 : i32 to vector<8x128xi32>
    %33 = arith.cmpi eq, %15, %32 : vector<8x128xi32>
    %34 = arith.andi %31, %33 : vector<8x128xi1>
    %c0_i32_12 = arith.constant 0 : i32
    %35 = vector.broadcast %c0_i32_12 : i32 to vector<8x128xi32>
    %36 = arith.cmpi eq, %14, %35 : vector<8x128xi32>
    %c1_i32 = arith.constant 1 : i32
    %37 = vector.broadcast %c1_i32 : i32 to vector<8x128xi32>
    %38 = arith.cmpi eq, %15, %37 : vector<8x128xi32>
    %39 = arith.andi %36, %38 : vector<8x128xi1>
    %c0_i32_13 = arith.constant 0 : i32
    %40 = vector.broadcast %c0_i32_13 : i32 to vector<8x128xi32>
    %41 = arith.cmpi eq, %14, %40 : vector<8x128xi32>
    %c2_i32 = arith.constant 2 : i32
    %42 = vector.broadcast %c2_i32 : i32 to vector<8x128xi32>
    %43 = arith.cmpi eq, %15, %42 : vector<8x128xi32>
    %44 = arith.andi %41, %43 : vector<8x128xi1>
    %cst_14 = arith.constant 0.000000e+00 : f32
    %45 = vector.broadcast %29 : f32 to vector<8x128xf32>
    %46 = vector.broadcast %cst_14 : f32 to vector<8x128xf32>
    %47 = arith.select %44, %45, %46 : vector<8x128xi1>, vector<8x128xf32>
    %48 = vector.broadcast %25 : f32 to vector<8x128xf32>
    %49 = arith.select %39, %48, %47 : vector<8x128xi1>, vector<8x128xf32>
    %50 = vector.broadcast %19 : f32 to vector<8x128xf32>
    %51 = arith.select %34, %50, %49 : vector<8x128xi1>, vector<8x128xf32>
    %c0_15 = arith.constant 0 : index
    %c0_16 = arith.constant 0 : index
    %52 = vector.load %arg3[%c0_15, %c0_16] : memref<8x128xf32, #tpu.memory_space<vmem>>, vector<8x128xf32>
    tpu.vector_store %arg3[%c0_15, %c0_16], %51 {strides = array<i32>} : memref<8x128xf32, #tpu.memory_space<vmem>>, vector<8x128xf32>,
    return
  }
  func.func @transform_0(%arg0: i32) -> (i32, i32) {
    %c0_i32 = arith.constant 0 : i32
    %c0_i32_0 = arith.constant 0 : i32
    return %arg0, %c0_i32 : i32, i32
  }
  func.func @transform_1(%arg0: i32) -> (i32, i32) {
    %c0_i32 = arith.constant 0 : i32
    %c0_i32_0 = arith.constant 0 : i32
    return %arg0, %c0_i32 : i32, i32
  }
  func.func @transform_2(%arg0: i32) -> (i32, i32) {
    %c0_i32 = arith.constant 0 : i32
    %c0_i32_0 = arith.constant 0 : i32
    return %arg0, %c0_i32 : i32, i32
  }
}

</mosaic_0001>

<llo_original>
// kernel: cobnet_loss.5
$region0: #{cobnet_loss.5}
  #allocation0 [shape = 'u32[]', space=smem, size = 0x4, offset = 0x4, fixed_abs, tag = 'smem constant byte address 0x4 - core index']
  #allocation1 [shape = 'u32[144,128]{1,0:T(1,128)}', space=vmem, size = 0x12000, scoped, tag = 'internal scratch']
  %s0 = inlined_call_operand.vmem [shape: f32[1,512], index: 0, kind: input, shape index: {}]
  %s1 = inlined_call_operand.vmem [shape: u8[1,512], index: 1, kind: input, shape index: {}]
  %s2 = inlined_call_operand.vmem [shape: f32[8,128], index: 2, kind: output, shape index: {}]
  %s3 = sld [smem:[#allocation0]]
  $region18: #{cobnet_loss.5} parent=0
    _
  %s5 = ssub.s32 1, %s3
  %s6 = scalar_select 0, %s5, %s3
  // Predicated region
  $region2: #{cobnet_loss.5} parent=0 // pred_check
    _
  $region3: #{cobnet_loss.5} parent=0 // pred_check_branch
    %8 = sbr.rel (0) target = $region5
  $region4: #{cobnet_loss.5} parent=0 // pred_region
    _
  $region5: #{cobnet_loss.5} parent=0 // pred_fallthru
    _
  // Predicated region
  $region6: #{cobnet_loss.5} parent=0 // pred_check
    _
  $region7: #{cobnet_loss.5} parent=0 // pred_check_branch
    %10 = sbr.rel (0) target = $region9
  $region8: #{cobnet_loss.5} parent=0 // pred_region
    _
  $region9: #{cobnet_loss.5} parent=0 // pred_fallthru
    _
  %v11 = vld [vmem:[%s0] sm:$0xf]
  %v12 = vld [vmem:[%s1] sm:$0xf]
  %v13 = vunpack.c.0.s8 %v12
  %v14 = vunpack.c.1.s8 %v12
  %v15 = vand.u32 %v13, 255
  %v16 = vand.u32 %v14, 255
  %v17 = vcvt.s32.f32 %v15
  %v18 = vcvt.s32.f32 %v16
  %v19 = vmax.f32 %v11, 1.1920929e-07
  %v20 = vmin.f32 %v19, 0.9999999
  %vm21 = vcmp.gt.f32.partialorder %v17, 0.5
  %vm22 = vcmp.gt.f32.partialorder %v18, 0.5
  %v23 = vsub.f32 1.0, %v20
  %v26 = vunpack.c.l.s4 286326784
  %v27 = vunpack.c.0.s8 %v26
  %v28 = vlaneseq
  %v29 = vshrl.u32 %v28, 7
  %v30 = vsub.s32 %v27, %v29
  %v31 = vrot.slane %v20, %v30
  %v33 = vunpack.c.l.s4 858989090
  %v34 = vunpack.c.0.s8 %v33
  %v35 = vlaneseq
  %v36 = vshrl.u32 %v35, 7
  %v37 = vsub.s32 %v34, %v36
  %v38 = vrot.slane %v20, %v37
  %v43 = vunpack.c.l.s4 286326784
  %v44 = vunpack.c.0.s8 %v43
  %v45 = vlaneseq
  %v46 = vshrl.u32 %v45, 7
  %v47 = vsub.s32 %v44, %v46
  %v48 = vrot.slane %v23, %v47
  %v50 = vunpack.c.l.s4 858989090
  %v51 = vunpack.c.0.s8 %v50
  %v52 = vlaneseq
  %v53 = vshrl.u32 %v52, 7
  %v54 = vsub.s32 %v51, %v53
  %v55 = vrot.slane %v23, %v54
  %v58 = vsel %vm21, %v31, %v48
  %v59 = vsel %vm22, %v38, %v55
  %v60 = vlog2.pop %v58
  %v61 = vmul.f32 %v60, 0.6931472
  %v62 = vlog2.pop %v59
  %v63 = vmul.f32 %v62, 0.6931472
  %v64 = vlaneseq
  %v65 = vshrl.u32 %v64, 7
  %v66 = vlaneseq
  %v67 = vand.u32 %v66, 127
  %v70 = vlaneseq
  %v71 = vshrl.u32 %v70, 7
  %v72 = vsub.s32 0, %v71
  %v73 = vrot.slane %v17, %v72
  %v74 = vlaneseq
  %v75 = vshrl.u32 %v74, 7
  %v76 = vsub.s32 4, %v75
  %v77 = vrot.slane %v17, %v76
  %v78 = vlaneseq
  %v79 = vshrl.u32 %v78, 7
  %v80 = vsub.s32 0, %v79
  %v81 = vrot.slane %v18, %v80
  %v82 = vlaneseq
  %v83 = vshrl.u32 %v82, 7
  %v84 = vsub.s32 4, %v83
  %v85 = vrot.slane %v18, %v84
  %vm90 = vcmask 1040384
  %v91 = vsel %vm90, %v73, 0.0
  %v92 = vsel %vm90, %v77, 0.0
  %v93 = vadd.f32 %v91, %v92
  %v94 = vsel %vm90, %v81, 0.0
  %v95 = vadd.f32 %v93, %v94
  %v96 = vsel %vm90, %v85, 0.0
  %v97 = vadd.f32 %v95, %v96
  %98 = vadd.xlane.f32.xlu0 %v97
  %v99 = vpop.xlane.xlu0 %98
  %v100 = vrot.slane %v99, 4
  %v101 = vadd.f32 %v99, %v100
  %v102 = vrot.slane %v101, 2
  %v103 = vadd.f32 %v101, %v102
  %v104 = vrot.slane %v103, 1
  %v105 = vadd.f32 %v103, %v104
  %s106 = vtos %v105
  %v107 = vsel %vm21, %v61, 0.0
  %v108 = vsel %vm22, %v63, 0.0
  %v111 = vlaneseq
  %v112 = vshrl.u32 %v111, 7
  %v113 = vsub.s32 0, %v112
  %v114 = vrot.slane %v107, %v113
  %v115 = vlaneseq
  %v116 = vshrl.u32 %v115, 7
  %v117 = vsub.s32 4, %v116
  %v118 = vrot.slane %v107, %v117
  %v119 = vlaneseq
  %v120 = vshrl.u32 %v119, 7
  %v121 = vsub.s32 0, %v120
  %v122 = vrot.slane %v108, %v121
  %v123 = vlaneseq
  %v124 = vshrl.u32 %v123, 7
  %v125 = vsub.s32 4, %v124
  %v126 = vrot.slane %v108, %v125
  %v131 = vsel %vm90, %v114, 0.0
  %v132 = vsel %vm90, %v118, 0.0
  %v133 = vadd.f32 %v131, %v132
  %v134 = vsel %vm90, %v122, 0.0
  %v135 = vadd.f32 %v133, %v134
  %v136 = vsel %vm90, %v126, 0.0
  %v137 = vadd.f32 %v135, %v136
  %138 = vadd.xlane.f32.xlu0 %v137
  %v139 = vpop.xlane.xlu0 %138
  %v140 = vrot.slane %v139, 4
  %v141 = vadd.f32 %v139, %v140
  %v142 = vrot.slane %v141, 2
  %v143 = vadd.f32 %v141, %v142
  %v144 = vrot.slane %v143, 1
  %v145 = vadd.f32 %v143, %v144
  %s146 = vtos %v145
  %v149 = vlaneseq
  %v150 = vshrl.u32 %v149, 7
  %v151 = vsub.s32 0, %v150
  %v152 = vrot.slane %v61, %v151
  %v153 = vlaneseq
  %v154 = vshrl.u32 %v153, 7
  %v155 = vsub.s32 4, %v154
  %v156 = vrot.slane %v61, %v155
  %v157 = vlaneseq
  %v158 = vshrl.u32 %v157, 7
  %v159 = vsub.s32 0, %v158
  %v160 = vrot.slane %v63, %v159
  %v161 = vlaneseq
  %v162 = vshrl.u32 %v161, 7
  %v163 = vsub.s32 4, %v162
  %v164 = vrot.slane %v63, %v163
  %v169 = vsel %vm90, %v152, 0.0
  %v170 = vsel %vm90, %v156, 0.0
  %v171 = vadd.f32 %v169, %v170
  %v172 = vsel %vm90, %v160, 0.0
  %v173 = vadd.f32 %v171, %v172
  %v174 = vsel %vm90, %v164, 0.0
  %v175 = vadd.f32 %v173, %v174
  %176 = vadd.xlane.f32.xlu0 %v175
  %v177 = vpop.xlane.xlu0 %176
  %v178 = vrot.slane %v177, 4
  %v179 = vadd.f32 %v177, %v178
  %v180 = vrot.slane %v179, 2
  %v181 = vadd.f32 %v179, %v180
  %v182 = vrot.slane %v181, 1
  %v183 = vadd.f32 %v181, %v182
  %s184 = vtos %v183
  %vm185 = vcmp.eq.s32.totalorder %v65, 0
  %vm186 = vcmp.eq.s32.totalorder %v67, 0
  %vm187 = vmand %vm185, %vm186
  %vm188 = vcmp.eq.s32.totalorder %v67, 1
  %vm189 = vmand %vm185, %vm188
  %vm190 = vcmp.eq.s32.totalorder %v67, 2
  %vm191 = vmand %vm185, %vm190
  %v192 = vstv %s184
  %v193 = vsel %vm191, %v192, 0.0
  %v194 = vstv %s146
  %v195 = vsel %vm189, %v194, %v193
  %v196 = vstv %s106
  %v197 = vsel %vm187, %v196, %v195
  %198 = vst [vmem:[%s2] sm:$0xff] %v197
  // Predicated region
  $region10: #{cobnet_loss.5} parent=0 // pred_check
    _
  $region11: #{cobnet_loss.5} parent=0 // pred_check_branch
    %200 = sbr.rel (0) target = $region13
  $region12: #{cobnet_loss.5} parent=0 // pred_region
    _
  $region13: #{cobnet_loss.5} parent=0 // pred_fallthru
    _
  // Predicated region
  $region14: #{cobnet_loss.5} parent=0 // pred_check
    _
  $region15: #{cobnet_loss.5} parent=0 // pred_check_branch
    %202 = sbr.rel (0) target = $region17
  $region16: #{cobnet_loss.5} parent=0 // pred_region
    _
  $region17: #{cobnet_loss.5} parent=0 // pred_fallthru
    _

</llo_original>
